<compile_context>
chip_gen: v5e
topology: v5e:2x2
jax: 0.10.0
libtpu: 0.0.40
codegen_flags: <defaults>
</compile_context>

<pallas_src>
import math
from functools import partial

import jax
import jax.numpy as jnp
from jax import lax
from jax.experimental import pallas as pl
from jax.experimental.pallas import tpu as pltpu


# --------------------------------------------------------------------------------------
# Tiling helpers
# --------------------------------------------------------------------------------------

def _pick_tile(n, preferred):
    """Largest tile <= preferred that divides n with an 8-aligned sublane dim.
    Falls back to the full extent (always legal for BlockSpec)."""
    if n <= preferred:
        return n
    for t in range(preferred, 0, -1):
        if n % t == 0 and t % 8 == 0:
            return t
    return n


_TM_PREF = 256   # row tile for linear projections
_TQ_PREF = 128   # query tile for attention
_TK_PREF = 512   # key/value tile for attention


# --------------------------------------------------------------------------------------
# Projection kernels (tiled over token rows, weights resident in VMEM)
# --------------------------------------------------------------------------------------

def _q_proj_kernel(x_ref, wq_ref, q_ref, *, scale):
    acc = jnp.dot(x_ref[...], wq_ref[...], preferred_element_type=jnp.float32)
    q_ref[...] = (acc * scale).astype(q_ref.dtype)   # softmax scale folded in for free


def _kv_proj_kernel(c_ref, wk_ref, wv_ref, k_ref, v_ref):
    c = c_ref[...]   # context activation read once, feeds both matmuls
    k_ref[...] = jnp.dot(c, wk_ref[...], preferred_element_type=jnp.float32).astype(k_ref.dtype)
    v_ref[...] = jnp.dot(c, wv_ref[...], preferred_element_type=jnp.float32).astype(v_ref.dtype)


def _qkv_proj_kernel(x_ref, wq_ref, wk_ref, wv_ref, q_ref, k_ref, v_ref, *, scale):
    xv = x_ref[...]  # self-attention: single HBM read feeds q, k and v
    q_ref[...] = (jnp.dot(xv, wq_ref[...], preferred_element_type=jnp.float32) * scale
                  ).astype(q_ref.dtype)
    k_ref[...] = jnp.dot(xv, wk_ref[...], preferred_element_type=jnp.float32).astype(k_ref.dtype)
    v_ref[...] = jnp.dot(xv, wv_ref[...], preferred_element_type=jnp.float32).astype(v_ref.dtype)


def _out_proj_kernel(x_ref, w_ref, b_ref, o_ref):
    acc = jnp.dot(x_ref[...], w_ref[...], preferred_element_type=jnp.float32)
    o_ref[...] = (acc + b_ref[...]).astype(o_ref.dtype)


def _row_grid_call(kernel, x2d, weights, n_outputs, cout, extra_in=()):
    """Common wrapper: grid over row tiles, full weights resident, 'parallel' axis."""
    T, Cin = x2d.shape
    tm = _pick_tile(T, _TM_PREF)
    grid = (T // tm,)
    row_spec = pl.BlockSpec((tm, Cin), lambda i: (i, 0))
    w_specs = [pl.BlockSpec(w.shape, lambda i: (0, 0)) for w in weights]
    extra_specs = [pl.BlockSpec(e.shape, lambda i: (0, 0)) for e in extra_in]
    out_spec = pl.BlockSpec((tm, cout), lambda i: (i, 0))
    out_shape = tuple(jax.ShapeDtypeStruct((T, cout), x2d.dtype) for _ in range(n_outputs))
    if n_outputs == 1:
        out_shape = out_shape[0]
        out_specs = out_spec
    else:
        out_specs = [out_spec] * n_outputs
    return pl.pallas_call(
        kernel,
        out_shape=out_shape,
        grid_spec=pltpu.PrefetchScalarGridSpec(
            num_scalar_prefetch=0,
            grid=grid,
            in_specs=[row_spec] + w_specs + extra_specs,
            out_specs=out_specs,
        ),
        compiler_params=pltpu.CompilerParams(dimension_semantics=("parallel",)),
    )(x2d, *weights, *extra_in)


def pallas_q_proj(x2d, wq, scale):
    return _row_grid_call(partial(_q_proj_kernel, scale=scale), x2d, [wq], 1, wq.shape[1])


def pallas_kv_proj(c2d, wk, wv):
    return _row_grid_call(_kv_proj_kernel, c2d, [wk, wv], 2, wk.shape[1])


def pallas_qkv_proj(x2d, wq, wk, wv, scale):
    return _row_grid_call(partial(_qkv_proj_kernel, scale=scale),
                          x2d, [wq, wk, wv], 3, wq.shape[1])


def pallas_out_proj(x2d, w, b):
    return _row_grid_call(_out_proj_kernel, x2d, [w], 1, w.shape[1],
                          extra_in=(b.reshape(1, w.shape[1]),))


# --------------------------------------------------------------------------------------
# Flash attention kernel (heads folded in; online softmax over kv tiles)
# --------------------------------------------------------------------------------------

def _flash_attn_kernel(q_ref, k_ref, v_ref, o_ref, m_ref, l_ref, acc_ref,
                       *, heads, dim_head):
    # blocks: q (1, tq, h*d) [scale already folded into q], k/v (1, tk, h*d),
    #         o (1, tq, h*d)   -- lane-dense output
    # scratch: m/l (h, tq, 1) f32, acc (h, tq, d) f32, resident across kv axis
    ki = pl.program_id(2)
    nk = pl.num_programs(2)

    @pl.when(ki == 0)
    def _init():
        m_ref[...] = jnp.full(m_ref.shape, -jnp.inf, dtype=m_ref.dtype)
        l_ref[...] = jnp.zeros(l_ref.shape, dtype=l_ref.dtype)
        acc_ref[...] = jnp.zeros(acc_ref.shape, dtype=acc_ref.dtype)

    q_all = q_ref[0]   # (tq, h*d)
    k_all = k_ref[0]   # (tk, h*d)
    v_all = v_ref[0]   # (tk, h*d)

    for hh in range(heads):
        lo = hh * dim_head
        hi = lo + dim_head
        qh = q_all[:, lo:hi]          # (tq, d)
        kh = k_all[:, lo:hi]          # (tk, d)
        vh = v_all[:, lo:hi]          # (tk, d)

        # contract last dims of both operands -> no in-kernel K transpose
        s = lax.dot_general(qh, kh, (((1,), (1,)), ((), ())),
                            preferred_element_type=jnp.float32)      # (tq, tk)

        m_prev = m_ref[hh]                                           # (tq, 1)
        m_new = jnp.maximum(m_prev, jnp.max(s, axis=-1, keepdims=True))
        alpha = jnp.exp(m_prev - m_new)                              # (tq, 1)
        p = jnp.exp(s - m_new)                                       # (tq, tk)

        l_ref[hh] = alpha * l_ref[hh] + jnp.sum(p, axis=-1, keepdims=True)
        acc_ref[hh] = alpha * acc_ref[hh] + jnp.dot(
            p.astype(vh.dtype), vh, preferred_element_type=jnp.float32)
        m_ref[hh] = m_new

    @pl.when(ki == nk - 1)
    def _finalize():
        use_approx = (o_ref.dtype == jnp.bfloat16)   # exact divide for f32 accuracy check
        cols = []
        for hh in range(heads):
            l_h = l_ref[hh]                                          # (tq, 1)
            inv = pl.reciprocal(l_h, approx=True) if use_approx else 1.0 / l_h
            cols.append(acc_ref[hh] * inv)                           # (tq, d)
        # single lane-dense store of the whole (tq, h*d) tile
        o_ref[0] = jnp.concatenate(cols, axis=-1).astype(o_ref.dtype)


def pallas_flash_attention(q, k, v, *, heads, dim_head):
    """q: (B, N, h*d) with softmax scale pre-applied; k/v: (B, M, h*d) -> (B, N, h*d)."""
    B, N, HD = q.shape
    M = k.shape[1]
    tq = _pick_tile(N, _TQ_PREF)
    tk = _pick_tile(M, _TK_PREF)
    grid = (B, N // tq, M // tk)   # reduction (kv) axis innermost

    return pl.pallas_call(
        partial(_flash_attn_kernel, heads=heads, dim_head=dim_head),
        out_shape=jax.ShapeDtypeStruct((B, N, HD), q.dtype),
        grid_spec=pltpu.PrefetchScalarGridSpec(
            num_scalar_prefetch=0,
            grid=grid,
            in_specs=[
                pl.BlockSpec((1, tq, HD), lambda b, qi, ki: (b, qi, 0)),
                pl.BlockSpec((1, tk, HD), lambda b, qi, ki: (b, ki, 0)),
                pl.BlockSpec((1, tk, HD), lambda b, qi, ki: (b, ki, 0)),
            ],
            out_specs=pl.BlockSpec((1, tq, HD), lambda b, qi, ki: (b, qi, 0)),
            scratch_shapes=[
                pltpu.VMEM((heads, tq, 1), jnp.float32),         # running max m
                pltpu.VMEM((heads, tq, 1), jnp.float32),         # running sum l
                pltpu.VMEM((heads, tq, dim_head), jnp.float32),  # output accumulator
            ],
        ),
        compiler_params=pltpu.CompilerParams(
            dimension_semantics=("parallel", "parallel", "arbitrary")),
    )(q, k, v)


# --------------------------------------------------------------------------------------
# Module
# --------------------------------------------------------------------------------------

class MemoryEfficientCrossAttention:
    """JAX/Pallas port of the PyTorch module. Weights initialized deterministically."""

    def __init__(self, query_dim, context_dim=None, heads=8, dim_head=64,
                 dropout=0.0, key=None):
        inner_dim = dim_head * heads
        context_dim = query_dim if context_dim is None else context_dim
        self.heads = heads
        self.dim_head = dim_head
        self.query_dim = query_dim
        self.context_dim = context_dim
        self.inner_dim = inner_dim

        if key is None:
            key = jax.random.PRNGKey(0)
        kq, kk, kv, ko, kb = jax.random.split(key, 5)

        def uniform_init(k, fan_in, shape):
            bound = 1.0 / math.sqrt(fan_in)
            return jax.random.uniform(k, shape, jnp.float32, -bound, bound)

        # Stored as (in_features, out_features) so y = x @ W (matches torch y = x @ W^T).
        self.w_q = uniform_init(kq, query_dim, (query_dim, inner_dim))
        self.w_k = uniform_init(kk, context_dim, (context_dim, inner_dim))
        self.w_v = uniform_init(kv, context_dim, (context_dim, inner_dim))
        self.w_out = uniform_init(ko, inner_dim, (inner_dim, query_dim))
        self.b_out = uniform_init(kb, inner_dim, (query_dim,))
        # dropout with p=0.0 / eval mode -> identity

    def __call__(self, x, context=None, mask=None):
        if mask is not None:
            raise NotImplementedError  # TODO(synk): mask path not in the reference module either
        B, N, _ = x.shape
        h, d = self.heads, self.dim_head
        scale = 1.0 / math.sqrt(d)   # xformers memory_efficient_attention default scale

        if context is None:
            # self-attention: single fused Q/K/V projection (one HBM read of x)
            M = N
            q, k, v = pallas_qkv_proj(x.reshape(B * N, self.query_dim),
                                      self.w_q, self.w_k, self.w_v, scale)
        else:
            M = context.shape[1]
            q = pallas_q_proj(x.reshape(B * N, self.query_dim), self.w_q, scale)
            k, v = pallas_kv_proj(context.reshape(B * M, self.context_dim),
                                  self.w_k, self.w_v)

        # keep (B, T, h*d) layout -- heads are sliced inside the attention kernel,
        # so no transpose/reshape HBM round trips.
        q = q.reshape(B, N, h * d)
        k = k.reshape(B, M, h * d)
        v = v.reshape(B, M, h * d)

        out = pallas_flash_attention(q, k, v, heads=h, dim_head=d)   # (B, N, h*d)

        # to_out: Linear + Dropout(identity)
        out = pallas_out_proj(out.reshape(B * N, h * d), self.w_out, self.b_out)
        return out.reshape(B, N, self.query_dim)


# --------------------------------------------------------------------------------------
# Reference (pure JAX) for verification
# --------------------------------------------------------------------------------------

def reference_forward(mod, x, context=None):
    context = x if context is None else context
    B, N, _ = x.shape
    M = context.shape[1]
    h, d = mod.heads, mod.dim_head
    q = x @ mod.w_q
    k = context @ mod.w_k
    v = context @ mod.w_v
    q = q.reshape(B, N, h, d).transpose(0, 2, 1, 3)
    k = k.reshape(B, M, h, d).transpose(0, 2, 1, 3)
    v = v.reshape(B, M, h, d).transpose(0, 2, 1, 3)
    s = jnp.einsum("bhnd,bhmd->bhnm", q, k) / math.sqrt(d)
    p = jax.nn.softmax(s, axis=-1)
    o = jnp.einsum("bhnm,bhmd->bhnd", p, v)
    o = o.transpose(0, 2, 1, 3).reshape(B, N, h * d)
    return o @ mod.w_out + mod.b_out


# --------------------------------------------------------------------------------------
# Main
# --------------------------------------------------------------------------------------

if __name__ == "__main__":
    key = jax.random.PRNGKey(0)
    k_x, k_ctx, k_params = jax.random.split(key, 3)

    B, N, M = 2, 16, 8
    query_dim, context_dim = 32, 16
    heads, dim_head = 4, 8

    x = jax.random.normal(k_x, (B, N, query_dim), jnp.float32)
    context = jax.random.normal(k_ctx, (B, M, context_dim), jnp.float32)

    # cross-attention path
    mod = MemoryEfficientCrossAttention(
        query_dim=query_dim, context_dim=context_dim,
        heads=heads, dim_head=dim_head, dropout=0.0, key=k_params)
    out = jax.block_until_ready(mod(x, context))
    ref = reference_forward(mod, x, context)
    assert out.shape == (B, N, query_dim)
    assert jnp.allclose(out, ref, atol=1e-4, rtol=1e-4), "cross-attn mismatch vs JAX reference"

    # self-attention path (fused QKV projection)
    mod_self = MemoryEfficientCrossAttention(
        query_dim=query_dim, context_dim=None,
        heads=heads, dim_head=dim_head, dropout=0.0, key=k_params)
    out_self = jax.block_until_ready(mod_self(x))
    ref_self = reference_forward(mod_self, x, None)
    assert out_self.shape == (B, N, query_dim)
    assert jnp.allclose(out_self, ref_self, atol=1e-4, rtol=1e-4), "self-attn mismatch vs JAX reference"

    print("KERNEL_OK")
</pallas_src>

<mosaic_0001>
module attributes {stable_mosaic.version = 11 : i64} {
  func.func @_q_proj_kernel(%arg0: i32, %arg1: memref<32x32xf32, #tpu.memory_space<vmem>>, %arg2: memref<32x32xf32, #tpu.memory_space<vmem>>, %arg3: memref<32x32xf32, #tpu.memory_space<vmem>>) attributes {dimension_semantics = [#tpu.dimension_semantics<parallel>], iteration_bounds = array<i64: 1>, scalar_prefetch = 0 : i64, scratch_operands = 0 : i64, tpu.core_type = #tpu.core_type<tc>, window_params = [{transform_indices = @transform_0, window_bounds = array<i64: 32, 32>}, {pipeline_mode = #tpu.pipeline_mode<synchronous>, transform_indices = @transform_1, window_bounds = array<i64: 32, 32>}, {transform_indices = @transform_2, window_bounds = array<i64: 32, 32>}]} {
    %c0 = arith.constant 0 : index
    %c0_0 = arith.constant 0 : index
    %0 = vector.load %arg1[%c0, %c0_0] : memref<32x32xf32, #tpu.memory_space<vmem>>, vector<32x32xf32>
    %c0_1 = arith.constant 0 : index
    %c0_2 = arith.constant 0 : index
    %1 = vector.load %arg2[%c0_1, %c0_2] : memref<32x32xf32, #tpu.memory_space<vmem>>, vector<32x32xf32>
    %cst = arith.constant dense<0.000000e+00> : vector<32x32xf32>
    %2 = tpu.matmul %0, %1, %cst {dimension_numbers = #tpu.dot_dimension_numbers<[1], [0], [0], [1], [0, 0, 1, 1], [], []>} : vector<32x32xf32>, vector<32x32xf32>, vector<32x32xf32> -> vector<32x32xf32>
    %cst_3 = arith.constant 0.353553385 : f32
    %3 = vector.broadcast %cst_3 : f32 to vector<32x32xf32>
    %4 = arith.mulf %2, %3 : vector<32x32xf32>
    %c0_4 = arith.constant 0 : index
    %c0_5 = arith.constant 0 : index
    %5 = vector.load %arg3[%c0_4, %c0_5] : memref<32x32xf32, #tpu.memory_space<vmem>>, vector<32x32xf32>
    tpu.vector_store %arg3[%c0_4, %c0_5], %4 {strides = array<i32>} : memref<32x32xf32, #tpu.memory_space<vmem>>, vector<32x32xf32>,
    return
  }
  func.func @transform_0(%arg0: i32) -> (i32, i32) {
    %c0_i32 = arith.constant 0 : i32
    %c0_i32_0 = arith.constant 0 : i32
    return %arg0, %c0_i32 : i32, i32
  }
  func.func @transform_1(%arg0: i32) -> (i32, i32) {
    %c0_i32 = arith.constant 0 : i32
    %c0_i32_0 = arith.constant 0 : i32
    %c0_i32_1 = arith.constant 0 : i32
    return %c0_i32, %c0_i32_0 : i32, i32
  }
  func.func @transform_2(%arg0: i32) -> (i32, i32) {
    %c0_i32 = arith.constant 0 : i32
    %c0_i32_0 = arith.constant 0 : i32
    return %arg0, %c0_i32 : i32, i32
  }
}

</mosaic_0001>

<llo_original>
// kernel: tpu_custom_call.1
$region0: #{tpu_custom_call.1}
  #allocation0 [shape = 'u32[]', space=smem, size = 0x4, offset = 0x4, fixed_abs, tag = 'smem constant byte address 0x4 - core index']
  #allocation1 [shape = 'u32[72,128]{1,0:T(1,128)}', space=vmem, size = 0x9000, scoped, tag = 'internal scratch']
  %s0 = inlined_call_operand.hbm [shape: f32[32,32], index: 0, kind: input, shape index: {}]
  %s1 = inlined_call_operand.hbm [shape: f32[32,32], index: 1, kind: input, shape index: {}]
  %s2 = inlined_call_operand.hbm [shape: f32[32,32], index: 2, kind: output, shape index: {}]
  %s3 = sld [smem:[#allocation0]]
  $region26: #{tpu_custom_call.1} parent=0
    _
  %s5 = ssub.s32 1, %s3
  %s6 = scalar_select 0, %s5, %s3
  $region1: #{tpu_custom_call.1} parent=0
    #allocation2 [shape = 'u8[16384]{0}', space=vmem, size = 0x4000, scoped, tag = 'input window, operand 0, single buffered']
    #allocation3 [shape = 's32[1]{0}', space=sflag, size = 0x4, scoped, tag = 'scoped memory for tpu_custom_call.1']
    #allocation4 [shape = 's32[1]{0}', space=sflag, size = 0x4, scoped, tag = 'scoped memory for tpu_custom_call.1']
    #allocation5 [shape = 'u8[16384]{0}', space=vmem, size = 0x4000, scoped, tag = 'input window, operand 1, single buffered']
    #allocation6 [shape = 's32[1]{0}', space=sflag, size = 0x4, scoped, tag = 'scoped memory for tpu_custom_call.1']
    #allocation7 [shape = 'u8[16384]{0}', space=vmem, size = 0x4000, scoped, tag = 'output window, operand 0, single buffered']
    %7 = vsyncpa [#allocation3], 0
    %8 = vsyncpa [#allocation6], 0
    %9 = vsyncpa [#allocation4], 0
    // Predicated region
    $region2: #{tpu_custom_call.1} parent=1 // pred_check
      _
    $region3: #{tpu_custom_call.1} parent=1 // pred_check_branch
      %11 = sbr.rel (0) target = $region5
    $region4: #{tpu_custom_call.1} parent=1 // pred_region
      %13 = vsyncadd [#allocation3], 0
      %s14 = sshll.u32 %s0, 4
      %s15 = int_to_ptr.hbm [resolvable:$true] %s14
      %s16 = sshll.u32 [#allocation2], 4
      %s17 = int_to_ptr.vmem [resolvable:$true] %s16
      %22 = dma.hbm_to_vmem [thread:$0]  %s15, 512, %s17, [#allocation3], 128, 128, 8
    $region5: #{tpu_custom_call.1} parent=1 // pred_fallthru
      _
    // Predicated region
    $region6: #{tpu_custom_call.1} parent=1 // pred_check
      _
    $region7: #{tpu_custom_call.1} parent=1 // pred_check_branch
      %24 = sbr.rel (0) target = $region9
    $region8: #{tpu_custom_call.1} parent=1 // pred_region
      %26 = vsyncadd [#allocation6], 0
      %s27 = sshll.u32 %s1, 4
      %s28 = int_to_ptr.hbm [resolvable:$true] %s27
      %s29 = sshll.u32 [#allocation5], 4
      %s30 = int_to_ptr.vmem [resolvable:$true] %s29
      %35 = dma.hbm_to_vmem [thread:$0]  %s28, 512, %s30, [#allocation6], 128, 128, 8
    $region9: #{tpu_custom_call.1} parent=1 // pred_fallthru
      _
    // Predicated region
    $region10: #{tpu_custom_call.1} parent=1 // pred_check
      _
    $region11: #{tpu_custom_call.1} parent=1 // pred_check_branch
      %37 = sbr.rel (0) target = $region13
    $region12: #{tpu_custom_call.1} parent=1 // pred_region
      %39 = dma.done [#allocation3], 512
    $region13: #{tpu_custom_call.1} parent=1 // pred_fallthru
      _
    // Predicated region
    $region14: #{tpu_custom_call.1} parent=1 // pred_check
      _
    $region15: #{tpu_custom_call.1} parent=1 // pred_check_branch
      %41 = sbr.rel (0) target = $region17
    $region16: #{tpu_custom_call.1} parent=1 // pred_region
      %43 = dma.done [#allocation6], 512
    $region17: #{tpu_custom_call.1} parent=1 // pred_fallthru
      _
    %v44 = vld [vmem:[#allocation2] sm:$0xff]
    %v45 = vld [vmem:[#allocation2 + $0x8] sm:$0xff]
    %v46 = vld [vmem:[#allocation2 + $0x10] sm:$0xff]
    %v47 = vld [vmem:[#allocation2 + $0x18] sm:$0xff]
    %v48 = vld [vmem:[#allocation5] sm:$0xff]
    %v49 = vld [vmem:[#allocation5 + $0x8] sm:$0xff]
    %v50 = vld [vmem:[#allocation5 + $0x10] sm:$0xff]
    %v51 = vld [vmem:[#allocation5 + $0x18] sm:$0xff]
    %vm52 = vcmask 261120
    %v54 = vsel %vm52, %v44, 0
    %v57 = vsel %vm52, %v45, 0
    %v60 = vsel %vm52, %v46, 0
    %v63 = vsel %vm52, %v47, 0
    %65 = vmatpush.msra.mxu0 0.0
    %66 = vmatpush.msra.mxu0 0.0
    %67 = vmatpush.msra.mxu0 0.0
    %68 = vmatpush.msra.mxu0 0.0
    %69 = vmatpush.msra.mxu0 0.0
    %70 = vmatpush.msra.mxu0 0.0
    %71 = vmatpush.msra.mxu0 0.0
    %72 = vmatpush.msra.mxu0 0.0
    %73 = vmatpush.msra.mxu0 0.0
    %74 = vmatpush.msra.mxu0 0.0
    %75 = vmatpush.msra.mxu0 0.0
    %76 = vmatpush.msra.mxu0 0.0
    %77 = vmatpush.msra.mxu0 %v51
    %78 = vmatpush.msra.mxu0 %v50
    %79 = vmatpush.msra.mxu0 %v49
    %80 = vmatpush.msra.mxu0 %v48
    %81 = vmatmul.f32.gmra.mxu0 %v54
    %v82 = vpop.f32.mrf.mxu0
    %v83 = vadd.f32 0.0, %v82
    %84 = vmatmul.f32.gmra.mxu0 %v57
    %v85 = vpop.f32.mrf.mxu0
    %v86 = vadd.f32 0.0, %v85
    %87 = vmatmul.f32.gmra.mxu0 %v60
    %v88 = vpop.f32.mrf.mxu0
    %v89 = vadd.f32 0.0, %v88
    %90 = vmatmul.f32.gmra.mxu0 %v63
    %v91 = vpop.f32.mrf.mxu0
    %v92 = vadd.f32 0.0, %v91
    %93 = vdwg.mxu0
    %v94 = vmul.f32 %v83, 0.35355338
    %v95 = vmul.f32 %v86, 0.35355338
    %v96 = vmul.f32 %v89, 0.35355338
    %v97 = vmul.f32 %v92, 0.35355338
    %98 = vst.msk [vmem:[#allocation7] sm:$0xff] %vm52, %v94
    %99 = vst.msk [vmem:[#allocation7 + $0x8] sm:$0xff] %vm52, %v95
    %100 = vst.msk [vmem:[#allocation7 + $0x10] sm:$0xff] %vm52, %v96
    %101 = vst.msk [vmem:[#allocation7 + $0x18] sm:$0xff] %vm52, %v97
    // Predicated region
    $region18: #{tpu_custom_call.1} parent=1 // pred_check
      _
    $region19: #{tpu_custom_call.1} parent=1 // pred_check_branch
      %103 = sbr.rel (0) target = $region21
    $region20: #{tpu_custom_call.1} parent=1 // pred_region
      %105 = vsyncadd [#allocation4], 0
      %s106 = sshll.u32 [#allocation7], 4
      %s107 = int_to_ptr.vmem [resolvable:$true] %s106
      %s108 = sshll.u32 %s2, 4
      %s109 = int_to_ptr.hbm [resolvable:$true] %s108
      %114 = dma.vmem_to_hbm [thread:$0]  %s107, 512, %s109, [#allocation4], 128, 128, 8
    $region21: #{tpu_custom_call.1} parent=1 // pred_fallthru
      _
    // Predicated region
    $region22: #{tpu_custom_call.1} parent=1 // pred_check
      _
    $region23: #{tpu_custom_call.1} parent=1 // pred_check_branch
      %116 = sbr.rel (0) target = $region25
    $region24: #{tpu_custom_call.1} parent=1 // pred_region
      %118 = dma.done [#allocation4], 512
    $region25: #{tpu_custom_call.1} parent=1 // pred_fallthru
      _
    %119 = vsyncpa [#allocation3], 1
    %120 = vsyncpa [#allocation6], 1
    %121 = vsyncpa [#allocation4], 1

</llo_original>
